<compile_context>
chip_gen: v7x
topology: tpu7x:2x2x1
jax: 0.10.0
libtpu: 0.0.40
codegen_flags: <defaults>
</compile_context>

<pallas_src>
import jax
import jax.numpy as jnp
from jax.experimental import pallas as pl
from jax.experimental.pallas import tpu as pltpu

BN_EPS = 1e-5


def _elu(y):
    # ELU with alpha=1.0 (PyTorch default); f32 elementwise math.
    return jnp.where(y > 0, y, jnp.exp(jnp.minimum(y, 0.0)) - 1.0)


def modeler_warm_kernel(adj_ref, emb_ref, w_ref, b_ref, out_ref):
    d = emb_ref.shape[1]
    num_labels = out_ref.shape[1] - d

    adj = adj_ref[...]          # (N, N) bf16
    b = b_ref[...]              # (4, D) f32   [b1', b2', b3, pad(linb)]

    def gcn(x, i):
        # GraphConv: adj @ (x @ W) + b   (BN affine pre-folded into W/b for i<2)
        xw = jnp.dot(x.astype(jnp.bfloat16), w_ref[i],
                     preferred_element_type=jnp.float32)
        agg = jnp.dot(adj, xw.astype(jnp.bfloat16),
                      preferred_element_type=jnp.float32)
        return agg + b[i:i + 1, :]

    x = emb_ref[...]            # (N, D) bf16
    x = _elu(gcn(x, 0))
    x = _elu(gcn(x, 1))
    x = gcn(x, 2)

    logits_full = jnp.dot(x.astype(jnp.bfloat16), w_ref[3],
                          preferred_element_type=jnp.float32) + b[3:4, :]

    # Single packed output slab: [x | logits]
    out_ref[...] = jnp.concatenate([x, logits_full[:, :num_labels]], axis=-1)


def modeler_warm_forward(adj, emb, w1, b1, w2, b2, w3, b3, gamma, beta, lw, lb):
    n, d = emb.shape
    num_labels = lw.shape[1]

    # Fold eval-mode BatchNorm (running_mean=0, running_var=1) into gcn1/gcn2:
    #   bn(adj @ (x @ W) + b) = adj @ (x @ (W*s)) + (b*s + beta),  s = gamma/sqrt(1+eps)
    scale = gamma / jnp.sqrt(1.0 + BN_EPS)        # (1, D), per output column
    w1f = w1 * scale
    w2f = w2 * scale
    b1f = b1 * scale + beta
    b2f = b2 * scale + beta

    # Pad the linear head into the same (D, D) / (1, D) slots so everything stacks.
    lw_pad = jnp.zeros((d, d), jnp.float32).at[:, :num_labels].set(lw)
    lb_pad = jnp.zeros((1, d), jnp.float32).at[:, :num_labels].set(lb)

    wstack = jnp.stack([w1f, w2f, w3, lw_pad]).astype(jnp.bfloat16)   # (4, D, D)
    bstack = jnp.concatenate([b1f, b2f, b3, lb_pad], axis=0)          # (4, D) f32
    adj_bf16 = adj.astype(jnp.bfloat16)                               # (N, N)
    emb_bf16 = emb.astype(jnp.bfloat16)                               # (N, D) half the DMA bytes

    vmem = pl.BlockSpec(memory_space=pltpu.MemorySpace.VMEM)
    packed = pl.pallas_call(
        modeler_warm_kernel,
        out_shape=jax.ShapeDtypeStruct((n, d + num_labels), jnp.float32),
        in_specs=[vmem, vmem, vmem, vmem],
        out_specs=vmem,
    )(adj_bf16, emb_bf16, wstack, bstack)

    return packed[:, :d], packed[:, d:]


def _reference(adj, emb, w1, b1, w2, b2, w3, b3, gamma, beta, lw, lb):
    hp = jax.lax.Precision.HIGHEST

    def gcn(x, w, b):
        return jnp.dot(adj, jnp.dot(x, w, precision=hp), precision=hp) + b

    def bn_elu(x):
        y = x * (gamma / jnp.sqrt(1.0 + BN_EPS)) + beta
        return _elu(y)

    x = gcn(emb, w1, b1)
    x = bn_elu(x)
    x = gcn(x, w2, b2)
    x = bn_elu(x)
    x = gcn(x, w3, b3)
    return x, jnp.dot(x, lw, precision=hp) + lb


if __name__ == "__main__":
    num_nodes, dim, num_labels = 64, 32, 8

    key = jax.random.PRNGKey(0)
    keys = jax.random.split(key, 12)

    # center_embedding: normal(mean=0, std=0.1), per init_weights()
    emb = 0.1 * jax.random.normal(keys[0], (num_nodes, dim), jnp.float32)

    # Symmetrically-normalized random adjacency (deterministic synthetic graph)
    a = (jax.random.uniform(keys[1], (num_nodes, num_nodes)) < 0.1).astype(jnp.float32)
    a = jnp.maximum(a, a.T) + jnp.eye(num_nodes, dtype=jnp.float32)
    deg = jnp.sum(a, axis=1)
    d_inv_sqrt = 1.0 / jnp.sqrt(deg)
    adj = a * d_inv_sqrt[:, None] * d_inv_sqrt[None, :]

    def glorot(k, fan_in, fan_out):
        lim = jnp.sqrt(6.0 / (fan_in + fan_out))
        return jax.random.uniform(k, (fan_in, fan_out), jnp.float32, -lim, lim)

    # GraphConv weights/biases (dim -> dim)
    w1 = glorot(keys[2], dim, dim); b1 = jnp.zeros((1, dim), jnp.float32)
    w2 = glorot(keys[3], dim, dim); b2 = jnp.zeros((1, dim), jnp.float32)
    w3 = glorot(keys[4], dim, dim); b3 = jnp.zeros((1, dim), jnp.float32)

    # BatchNorm1d params (shared module applied twice)
    gamma = jnp.ones((1, dim), jnp.float32)
    beta = jnp.zeros((1, dim), jnp.float32)

    # Linear(dim, num_labels)
    lw = glorot(keys[5], dim, num_labels)
    lb = 0.01 * jax.random.normal(keys[6], (1, num_labels), jnp.float32)

    x_out, logits = modeler_warm_forward(
        adj, emb, w1, b1, w2, b2, w3, b3, gamma, beta, lw, lb
    )
    jax.block_until_ready((x_out, logits))

    x_ref, logits_ref = _reference(
        adj, emb, w1, b1, w2, b2, w3, b3, gamma, beta, lw, lb
    )
    assert x_out.shape == (num_nodes, dim)
    assert logits.shape == (num_nodes, num_labels)
    assert jnp.all(jnp.isfinite(x_out)) and jnp.all(jnp.isfinite(logits))
    # bf16 MXU operands vs. f32 HIGHEST-precision reference: loose tolerance.
    assert jnp.allclose(x_out, x_ref, atol=1e-2, rtol=1e-2)
    assert jnp.allclose(logits, logits_ref, atol=1e-2, rtol=1e-2)

    print("KERNEL_OK")
</pallas_src>

<mosaic_0001>
module attributes {stable_mosaic.version = 11 : i64} {
  func.func @modeler_warm_kernel(%arg0: memref<64x64xbf16, #tpu.memory_space<vmem>>, %arg1: memref<64x32xbf16, #tpu.memory_space<vmem>>, %arg2: memref<4x32x32xbf16, #tpu.memory_space<vmem>>, %arg3: memref<4x32xf32, #tpu.memory_space<vmem>>, %arg4: memref<64x40xf32, #tpu.memory_space<vmem>>) attributes {dimension_semantics = [], scalar_prefetch = 0 : i64, scratch_operands = 0 : i64, tpu.core_type = #tpu.core_type<tc>} {
    %c0 = arith.constant 0 : index
    %c0_0 = arith.constant 0 : index
    %0 = vector.load %arg0[%c0, %c0_0] : memref<64x64xbf16, #tpu.memory_space<vmem>>, vector<64x64xbf16>
    %c0_1 = arith.constant 0 : index
    %c0_2 = arith.constant 0 : index
    %1 = vector.load %arg3[%c0_1, %c0_2] : memref<4x32xf32, #tpu.memory_space<vmem>>, vector<4x32xf32>
    %c0_3 = arith.constant 0 : index
    %c0_4 = arith.constant 0 : index
    %2 = vector.load %arg1[%c0_3, %c0_4] : memref<64x32xbf16, #tpu.memory_space<vmem>>, vector<64x32xbf16>
    %c0_5 = arith.constant 0 : index
    %c0_6 = arith.constant 0 : index
    %c0_7 = arith.constant 0 : index
    %3 = vector.load %arg2[%c0_5, %c0_6, %c0_7] : memref<4x32x32xbf16, #tpu.memory_space<vmem>>, vector<1x32x32xbf16>
    %4 = vector.shape_cast %3 : vector<1x32x32xbf16> to vector<32x32xbf16>
    %cst = arith.constant dense<0.000000e+00> : vector<64x32xf32>
    %5 = tpu.matmul %2, %4, %cst {dimension_numbers = #tpu.dot_dimension_numbers<[1], [0], [0], [1], [0, 0, 1, 1], [], []>} : vector<64x32xbf16>, vector<32x32xbf16>, vector<64x32xf32> -> vector<64x32xf32>
    %6 = arith.truncf %5 : vector<64x32xf32> to vector<64x32xbf16>
    %cst_8 = arith.constant dense<0.000000e+00> : vector<64x32xf32>
    %7 = tpu.matmul %0, %6, %cst_8 {dimension_numbers = #tpu.dot_dimension_numbers<[1], [0], [0], [1], [0, 0, 1, 1], [], []>} : vector<64x64xbf16>, vector<64x32xbf16>, vector<64x32xf32> -> vector<64x32xf32>
    %8 = vector.extract_strided_slice %1 {offsets = [0, 0], sizes = [1, 32], strides = [1, 1]} : vector<4x32xf32> to vector<1x32xf32>
    %9 = vector.broadcast %8 : vector<1x32xf32> to vector<64x32xf32>
    %10 = arith.addf %7, %9 : vector<64x32xf32>
    %cst_9 = arith.constant 0.000000e+00 : f32
    %11 = vector.broadcast %cst_9 : f32 to vector<64x32xf32>
    %12 = arith.cmpf ogt, %10, %11 : vector<64x32xf32>
    %cst_10 = arith.constant 0.000000e+00 : f32
    %13 = vector.broadcast %cst_10 : f32 to vector<64x32xf32>
    %14 = arith.minimumf %10, %13 : vector<64x32xf32>
    %15 = math.exp %14 : vector<64x32xf32>
    %cst_11 = arith.constant 1.000000e+00 : f32
    %16 = vector.broadcast %cst_11 : f32 to vector<64x32xf32>
    %17 = arith.subf %15, %16 : vector<64x32xf32>
    %18 = arith.select %12, %10, %17 : vector<64x32xi1>, vector<64x32xf32>
    %19 = arith.truncf %18 : vector<64x32xf32> to vector<64x32xbf16>
    %c1 = arith.constant 1 : index
    %c0_12 = arith.constant 0 : index
    %c0_13 = arith.constant 0 : index
    %20 = vector.load %arg2[%c1, %c0_12, %c0_13] : memref<4x32x32xbf16, #tpu.memory_space<vmem>>, vector<1x32x32xbf16>
    %21 = vector.shape_cast %20 : vector<1x32x32xbf16> to vector<32x32xbf16>
    %cst_14 = arith.constant dense<0.000000e+00> : vector<64x32xf32>
    %22 = tpu.matmul %19, %21, %cst_14 {dimension_numbers = #tpu.dot_dimension_numbers<[1], [0], [0], [1], [0, 0, 1, 1], [], []>} : vector<64x32xbf16>, vector<32x32xbf16>, vector<64x32xf32> -> vector<64x32xf32>
    %23 = arith.truncf %22 : vector<64x32xf32> to vector<64x32xbf16>
    %cst_15 = arith.constant dense<0.000000e+00> : vector<64x32xf32>
    %24 = tpu.matmul %0, %23, %cst_15 {dimension_numbers = #tpu.dot_dimension_numbers<[1], [0], [0], [1], [0, 0, 1, 1], [], []>} : vector<64x64xbf16>, vector<64x32xbf16>, vector<64x32xf32> -> vector<64x32xf32>
    %25 = vector.extract_strided_slice %1 {offsets = [1, 0], sizes = [1, 32], strides = [1, 1]} : vector<4x32xf32> to vector<1x32xf32>
    %26 = vector.broadcast %25 : vector<1x32xf32> to vector<64x32xf32>
    %27 = arith.addf %24, %26 : vector<64x32xf32>
    %cst_16 = arith.constant 0.000000e+00 : f32
    %28 = vector.broadcast %cst_16 : f32 to vector<64x32xf32>
    %29 = arith.cmpf ogt, %27, %28 : vector<64x32xf32>
    %cst_17 = arith.constant 0.000000e+00 : f32
    %30 = vector.broadcast %cst_17 : f32 to vector<64x32xf32>
    %31 = arith.minimumf %27, %30 : vector<64x32xf32>
    %32 = math.exp %31 : vector<64x32xf32>
    %cst_18 = arith.constant 1.000000e+00 : f32
    %33 = vector.broadcast %cst_18 : f32 to vector<64x32xf32>
    %34 = arith.subf %32, %33 : vector<64x32xf32>
    %35 = arith.select %29, %27, %34 : vector<64x32xi1>, vector<64x32xf32>
    %36 = arith.truncf %35 : vector<64x32xf32> to vector<64x32xbf16>
    %c2 = arith.constant 2 : index
    %c0_19 = arith.constant 0 : index
    %c0_20 = arith.constant 0 : index
    %37 = vector.load %arg2[%c2, %c0_19, %c0_20] : memref<4x32x32xbf16, #tpu.memory_space<vmem>>, vector<1x32x32xbf16>
    %38 = vector.shape_cast %37 : vector<1x32x32xbf16> to vector<32x32xbf16>
    %cst_21 = arith.constant dense<0.000000e+00> : vector<64x32xf32>
    %39 = tpu.matmul %36, %38, %cst_21 {dimension_numbers = #tpu.dot_dimension_numbers<[1], [0], [0], [1], [0, 0, 1, 1], [], []>} : vector<64x32xbf16>, vector<32x32xbf16>, vector<64x32xf32> -> vector<64x32xf32>
    %40 = arith.truncf %39 : vector<64x32xf32> to vector<64x32xbf16>
    %cst_22 = arith.constant dense<0.000000e+00> : vector<64x32xf32>
    %41 = tpu.matmul %0, %40, %cst_22 {dimension_numbers = #tpu.dot_dimension_numbers<[1], [0], [0], [1], [0, 0, 1, 1], [], []>} : vector<64x64xbf16>, vector<64x32xbf16>, vector<64x32xf32> -> vector<64x32xf32>
    %42 = vector.extract_strided_slice %1 {offsets = [2, 0], sizes = [1, 32], strides = [1, 1]} : vector<4x32xf32> to vector<1x32xf32>
    %43 = vector.broadcast %42 : vector<1x32xf32> to vector<64x32xf32>
    %44 = arith.addf %41, %43 : vector<64x32xf32>
    %45 = arith.truncf %44 : vector<64x32xf32> to vector<64x32xbf16>
    %c3 = arith.constant 3 : index
    %c0_23 = arith.constant 0 : index
    %c0_24 = arith.constant 0 : index
    %46 = vector.load %arg2[%c3, %c0_23, %c0_24] : memref<4x32x32xbf16, #tpu.memory_space<vmem>>, vector<1x32x32xbf16>
    %47 = vector.shape_cast %46 : vector<1x32x32xbf16> to vector<32x32xbf16>
    %cst_25 = arith.constant dense<0.000000e+00> : vector<64x32xf32>
    %48 = tpu.matmul %45, %47, %cst_25 {dimension_numbers = #tpu.dot_dimension_numbers<[1], [0], [0], [1], [0, 0, 1, 1], [], []>} : vector<64x32xbf16>, vector<32x32xbf16>, vector<64x32xf32> -> vector<64x32xf32>
    %49 = vector.extract_strided_slice %1 {offsets = [3, 0], sizes = [1, 32], strides = [1, 1]} : vector<4x32xf32> to vector<1x32xf32>
    %50 = vector.broadcast %49 : vector<1x32xf32> to vector<64x32xf32>
    %51 = arith.addf %48, %50 : vector<64x32xf32>
    %52 = vector.extract_strided_slice %51 {offsets = [0, 0], sizes = [64, 8], strides = [1, 1]} : vector<64x32xf32> to vector<64x8xf32>
    %53 = tpu.concatenate %44, %52 in 1 : vector<64x32xf32>, vector<64x8xf32> -> vector<64x40xf32>
    %c0_26 = arith.constant 0 : index
    %c0_27 = arith.constant 0 : index
    %54 = vector.load %arg4[%c0_26, %c0_27] : memref<64x40xf32, #tpu.memory_space<vmem>>, vector<64x40xf32>
    tpu.vector_store %arg4[%c0_26, %c0_27], %53 {strides = array<i32>} : memref<64x40xf32, #tpu.memory_space<vmem>>, vector<64x40xf32>,
    return
  }
}

</mosaic_0001>

<llo_original>
// kernel: tpu_custom_call.1
$region0: #{tpu_custom_call.1}
  #allocation0 [shape = 'u32[]', space=smem, size = 0x4, offset = 0x4, fixed_abs, tag = 'smem constant byte address 0x4 - core index']
  #allocation1 [shape = 'u32[144,128]{1,0:T(1,128)}', space=vmem, size = 0x12000, scoped, tag = 'internal scratch']
  %s0 = inlined_call_operand.vmem [shape: bf16[64,64], index: 0, kind: input, shape index: {}]
  %s1 = inlined_call_operand.vmem [shape: bf16[64,32], index: 1, kind: input, shape index: {}]
  %s2 = inlined_call_operand.hbm [shape: bf16[4,32,32], index: 2, kind: input, shape index: {}]
  %s3 = inlined_call_operand.vmem [shape: f32[4,32], index: 3, kind: input, shape index: {}]
  %s4 = inlined_call_operand.vmem [shape: f32[64,40], index: 4, kind: output, shape index: {}]
  %s5 = sld [smem:[#allocation0]]
  $region30: #{tpu_custom_call.1} parent=0
    _
  %s7 = ssub.s32 1, %s5
  %s8 = scalar_select 0, %s7, %s5
  $region1: #{tpu_custom_call.1} parent=0
    #allocation2 [shape = 'u8[32768]{0}', space=vmem, size = 0x8000, scoped, tag = 'input window, operand 2, single buffered']
    #allocation3 [shape = 's32[1]{0}', space=sflag, size = 0x4, scoped, tag = 'scoped memory for tpu_custom_call.1']
    %9 = vsyncpa [#allocation3], 0
    // Predicated region
    $region2: #{tpu_custom_call.1} parent=1 // pred_check
      _
    $region3: #{tpu_custom_call.1} parent=1 // pred_check_branch
      %11 = sbr.rel (0) target = $region5
    $region4: #{tpu_custom_call.1} parent=1 // pred_region
      _
    $region5: #{tpu_custom_call.1} parent=1 // pred_fallthru
      _
    // Predicated region
    $region6: #{tpu_custom_call.1} parent=1 // pred_check
      _
    $region7: #{tpu_custom_call.1} parent=1 // pred_check_branch
      %13 = sbr.rel (0) target = $region9
    $region8: #{tpu_custom_call.1} parent=1 // pred_region
      _
    $region9: #{tpu_custom_call.1} parent=1 // pred_fallthru
      _
    // Predicated region
    $region10: #{tpu_custom_call.1} parent=1 // pred_check
      _
    $region11: #{tpu_custom_call.1} parent=1 // pred_check_branch
      %15 = sbr.rel (0) target = $region13
    $region12: #{tpu_custom_call.1} parent=1 // pred_region
      %s17 = ssub.s32 1024, 1024
      %18 = vsyncadd [#allocation3], %s17
      %s19 = sshll.u32 [#allocation2], 4
      %s20 = int_to_ptr.vmem [resolvable:$true] %s19
      %25 = dma.hbm_to_vmem [thread:$0]  %s2, 1024, %s20, [#allocation3], 64, 64, 4
    $region13: #{tpu_custom_call.1} parent=1 // pred_fallthru
      _
    // Predicated region
    $region14: #{tpu_custom_call.1} parent=1 // pred_check
      _
    $region15: #{tpu_custom_call.1} parent=1 // pred_check_branch
      %27 = sbr.rel (0) target = $region17
    $region16: #{tpu_custom_call.1} parent=1 // pred_region
      _
    $region17: #{tpu_custom_call.1} parent=1 // pred_fallthru
      _
    // Predicated region
    $region18: #{tpu_custom_call.1} parent=1 // pred_check
      _
    $region19: #{tpu_custom_call.1} parent=1 // pred_check_branch
      %29 = sbr.rel (0) target = $region21
    $region20: #{tpu_custom_call.1} parent=1 // pred_region
      %30 = dma.done [#allocation3], 1024
    $region21: #{tpu_custom_call.1} parent=1 // pred_fallthru
      _
    %v32 = vld [vmem:[%s0] sm:$0xf]
    %v33 = vld [vmem:[%s0 + $0x4] sm:$0xf]
    %v34 = vld [vmem:[%s0 + $0x8] sm:$0xf]
    %v35 = vld [vmem:[%s0 + $0xc] sm:$0xf]
    %v36 = vld [vmem:[%s0 + $0x10] sm:$0xf]
    %v37 = vld [vmem:[%s0 + $0x14] sm:$0xf]
    %v38 = vld [vmem:[%s0 + $0x18] sm:$0xf]
    %v39 = vld [vmem:[%s0 + $0x1c] sm:$0xf]
    %v40 = vld [vmem:[%s3] sm:$0xf]
    %v41 = vld [vmem:[%s1] sm:$0xf]
    %v42 = vld [vmem:[%s1 + $0x4] sm:$0xf]
    %v43 = vld [vmem:[%s1 + $0x8] sm:$0xf]
    %v44 = vld [vmem:[%s1 + $0xc] sm:$0xf]
    %v45 = vld [vmem:[%s1 + $0x10] sm:$0xf]
    %v46 = vld [vmem:[%s1 + $0x14] sm:$0xf]
    %v47 = vld [vmem:[%s1 + $0x18] sm:$0xf]
    %v48 = vld [vmem:[%s1 + $0x1c] sm:$0xf]
    %v49 = vld [vmem:[#allocation2] sm:$0xf]
    %v50 = vld [vmem:[#allocation2 + $0x4] sm:$0xf]
    %v51 = vld [vmem:[#allocation2 + $0x8] sm:$0xf]
    %v52 = vld [vmem:[#allocation2 + $0xc] sm:$0xf]
    %v61 = vunpack.c.l.b16 %v41
    %v62 = vunpack.c.l.b16 %v42
    %v63 = vunpack.c.l.b16 %v43
    %v64 = vunpack.c.l.b16 %v44
    %v65 = vunpack.c.l.b16 %v45
    %v66 = vunpack.c.l.b16 %v46
    %v67 = vunpack.c.l.b16 %v47
    %v68 = vunpack.c.l.b16 %v48
    %v69 = vpack.c.b16 %v62, %v61
    %v70 = vpack.c.b16 %v64, %v63
    %v71 = vpack.c.b16 %v66, %v65
    %v72 = vpack.c.b16 %v68, %v67
    %v77 = vunpack.c.l.b16 %v49
    %v78 = vunpack.c.l.b16 %v50
    %v79 = vunpack.c.l.b16 %v51
    %v80 = vunpack.c.l.b16 %v52
    %v81 = vpack.c.b16 %v78, %v77
    %v82 = vpack.c.b16 %v80, %v79
    %vm85 = vcmask 261120
    %v87 = vsel %vm85, %v69, 0
    %v90 = vsel %vm85, %v70, 0
    %v93 = vsel %vm85, %v71, 0
    %v96 = vsel %vm85, %v72, 0
    %98 = vmatprep.subr.bf16.mxu0 0
    %99 = vmatpush1.bf16.msra.mxu0 %v81
    %100 = vmatprep.subr.bf16.mxu0 0
    %101 = vmatpush1.bf16.msra.mxu0 %v82
    %102 = vmatprep.subr.bf16.mxu0 0
    %103 = vmatpush1.bf16.msra.mxu0 0
    %104 = vmatprep.subr.bf16.mxu0 0
    %105 = vmatpush1.bf16.msra.mxu0 0
    %106 = vmatprep.subr.bf16.mxu0 0
    %107 = vmatpush1.bf16.msra.mxu0 0
    %108 = vmatprep.subr.bf16.mxu0 0
    %109 = vmatpush1.bf16.msra.mxu0 0
    %110 = vmatprep.subr.bf16.mxu0 0
    %111 = vmatpush1.bf16.msra.mxu0 0
    %112 = vmatprep.subr.bf16.mxu0 0
    %113 = vmatpush1.bf16.msra.mxu0 0
    %114 = vmatprep.subr.bf16.mxu0 0
    %115 = vmatpush1.bf16.msra.mxu0 0
    %116 = vmatprep.subr.bf16.mxu0 0
    %117 = vmatpush1.bf16.msra.mxu0 0
    %118 = vmatprep.subr.bf16.mxu0 0
    %119 = vmatpush1.bf16.msra.mxu0 0
    %120 = vmatprep.subr.bf16.mxu0 0
    %121 = vmatpush1.bf16.msra.mxu0 0
    %122 = vmatprep.subr.bf16.mxu0 0
    %123 = vmatpush1.bf16.msra.mxu0 0
    %124 = vmatprep.subr.bf16.mxu0 0
    %125 = vmatpush1.bf16.msra.mxu0 0
    %126 = vmatprep.subr.bf16.mxu0 0
    %127 = vmatpush1.bf16.msra.mxu0 0
    %128 = vmatprep.subr.bf16.mxu0 0
    %129 = vmatpush1.bf16.msra.mxu0 0
    %130 = vmatprep.mubr.bf16.mxu0 0
    %131 = vmatmul.mubr.bf16.gmra.mrb[0].mxu0 %v87
    %v132 = vpop.f32.mrb[0].mxu0
    %v133 = vadd.f32 0.0, %v132
    %v134 = vpop.f32.mrb[0].mxu0
    %v135 = vpop.f32.mrb[0].mxu0
    %v136 = vadd.f32 0.0, %v135
    %v137 = vpop.f32.mrb[0].mxu0
    %138 = vmatprep.mubr.bf16.mxu0 0
    %139 = vmatmul.mubr.bf16.gmra.mrb[0].mxu0 %v90
    %v140 = vpop.f32.mrb[0].mxu0
    %v141 = vadd.f32 0.0, %v140
    %v142 = vpop.f32.mrb[0].mxu0
    %v143 = vpop.f32.mrb[0].mxu0
    %v144 = vadd.f32 0.0, %v143
    %v145 = vpop.f32.mrb[0].mxu0
    %146 = vmatprep.mubr.bf16.mxu0 0
    %147 = vmatmul.mubr.bf16.gmra.mrb[0].mxu0 %v93
    %v148 = vpop.f32.mrb[0].mxu0
    %v149 = vadd.f32 0.0, %v148
    %v150 = vpop.f32.mrb[0].mxu0
    %v151 = vpop.f32.mrb[0].mxu0
    %v152 = vadd.f32 0.0, %v151
    %v153 = vpop.f32.mrb[0].mxu0
    %154 = vmatprep.mubr.bf16.mxu0 0
    %155 = vmatmul.mubr.bf16.gmra.mrb[0].mxu0 %v96
    %v156 = vpop.f32.mrb[0].mxu0
    %v157 = vadd.f32 0.0, %v156
    %v158 = vpop.f32.mrb[0].mxu0
    %v159 = vpop.f32.mrb[0].mxu0
    %v160 = vadd.f32 0.0, %v159
    %v161 = vpop.f32.mrb[0].mxu0
    %162 = vdwg.mxu0
    %v163 = vpack.c.bf16 %v136, %v133
    %v164 = vpack.c.bf16 %v144, %v141
    %v165 = vpack.c.bf16 %v152, %v149
    %v166 = vpack.c.bf16 %v160, %v157
    %v167 = vlaneseq
    %v168 = vshrl.u32 %v167, 7
    %v169 = vsub.s32 0, %v168
    %v170 = vrot.slane %v40, %v169
    %v179 = vunpack.c.l.b16 %v32
    %v180 = vunpack.c.l.b16 %v33
    %v181 = vunpack.c.l.b16 %v34
    %v182 = vunpack.c.l.b16 %v35
    %v183 = vunpack.c.l.b16 %v36
    %v184 = vunpack.c.l.b16 %v37
    %v185 = vunpack.c.l.b16 %v38
    %v186 = vunpack.c.l.b16 %v39
    %v187 = vpack.c.b16 %v180, %v179
    %v188 = vpack.c.b16 %v182, %v181
    %v189 = vpack.c.b16 %v184, %v183
    %v190 = vpack.c.b16 %v186, %v185
    %vm191 = vcmask 523264
    %v193 = vsel %vm191, %v187, 0
    %v196 = vsel %vm191, %v188, 0
    %v199 = vsel %vm191, %v189, 0
    %v202 = vsel %vm191, %v190, 0
    %204 = vmatprep.subr.bf16.mxu0 0
    %205 = vmatpush1.bf16.msra.mxu0 %v163
    %206 = vmatprep.subr.bf16.mxu0 0
    %207 = vmatpush1.bf16.msra.mxu0 %v164
    %208 = vmatprep.subr.bf16.mxu0 0
    %209 = vmatpush1.bf16.msra.mxu0 %v165
    %210 = vmatprep.subr.bf16.mxu0 0
    %211 = vmatpush1.bf16.msra.mxu0 %v166
    %212 = vmatprep.subr.bf16.mxu0 0
    %213 = vmatpush1.bf16.msra.mxu0 0
    %214 = vmatprep.subr.bf16.mxu0 0
    %215 = vmatpush1.bf16.msra.mxu0 0
    %216 = vmatprep.subr.bf16.mxu0 0
    %217 = vmatpush1.bf16.msra.mxu0 0
    %218 = vmatprep.subr.bf16.mxu0 0
    %219 = vmatpush1.bf16.msra.mxu0 0
    %220 = vmatprep.subr.bf16.mxu0 0
    %221 = vmatpush1.bf16.msra.mxu0 0
    %222 = vmatprep.subr.bf16.mxu0 0
    %223 = vmatpush1.bf16.msra.mxu0 0
    %224 = vmatprep.subr.bf16.mxu0 0
    %225 = vmatpush1.bf16.msra.mxu0 0
    %226 = vmatprep.subr.bf16.mxu0 0
    %227 = vmatpush1.bf16.msra.mxu0 0
    %228 = vmatprep.subr.bf16.mxu0 0
    %229 = vmatpush1.bf16.msra.mxu0 0
    %230 = vmatprep.subr.bf16.mxu0 0
    %231 = vmatpush1.bf16.msra.mxu0 0
    %232 = vmatprep.subr.bf16.mxu0 0
    %233 = vmatpush1.bf16.msra.mxu0 0
    %234 = vmatprep.subr.bf16.mxu0 0
    %235 = vmatpush1.bf16.msra.mxu0 0
    %236 = vmatprep.mubr.bf16.mxu0 0
    %237 = vmatmul.mubr.bf16.gmra.mrb[0].mxu0 %v193
    %v238 = vpop.f32.mrb[0].mxu0
    %v239 = vadd.f32 %v170, %v238
    %v240 = vpop.f32.mrb[0].mxu0
    %v241 = vpop.f32.mrb[0].mxu0
    %v242 = vadd.f32 %v170, %v241
    %v243 = vpop.f32.mrb[0].mxu0
    %244 = vmatprep.mubr.bf16.mxu0 0
    %245 = vmatmul.mubr.bf16.gmra.mrb[0].mxu0 %v196
    %v246 = vpop.f32.mrb[0].mxu0
    %v247 = vadd.f32 %v170, %v246
    %v248 = vpop.f32.mrb[0].mxu0
    %v249 = vpop.f32.mrb[0].mxu0
    %v250 = vadd.f32 %v170, %v249
    %v251 = vpop.f32.mrb[0].mxu0
    %252 = vmatprep.mubr.bf16.mxu0 0
    %253 = vmatmul.mubr.bf16.gmra.mrb[0].mxu0 %v199
    %v254 = vpop.f32.mrb[0].mxu0
    %v255 = vadd.f32 %v170, %v254
    %v256 = vpop.f32.mrb[0].mxu0
    %v257 = vpop.f32.mrb[0].mxu0
    %v258 = vadd.f32 %v170, %v257
    %v259 = vpop.f32.mrb[0].mxu0
    %260 = vmatprep.mubr.bf16.mxu0 0
    %261 = vmatmul.mubr.bf16.gmra.mrb[0].mxu0 %v202
    %v262 = vpop.f32.mrb[0].mxu0
    %v263 = vadd.f32 %v170, %v262
    %v264 = vpop.f32.mrb[0].mxu0
    %v265 = vpop.f32.mrb[0].mxu0
    %v266 = vadd.f32 %v170, %v265
    %v267 = vpop.f32.mrb[0].mxu0
    %268 = vdwg.mxu0
    %vm269 = vcmp.gt.f32.partialorder %v239, 0.0
    %vm270 = vcmp.gt.f32.partialorder %v242, 0.0
    %vm271 = vcmp.gt.f32.partialorder %v247, 0.0
    %vm272 = vcmp.gt.f32.partialorder %v250, 0.0
    %vm273 = vcmp.gt.f32.partialorder %v255, 0.0
    %vm274 = vcmp.gt.f32.partialorder %v258, 0.0
    %vm275 = vcmp.gt.f32.partialorder %v263, 0.0
    %vm276 = vcmp.gt.f32.partialorder %v266, 0.0
    %v277 = vmin.f32 %v239, 0.0
    %v278 = vmin.f32 %v242, 0.0
    %v279 = vmin.f32 %v247, 0.0
    %v280 = vmin.f32 %v250, 0.0
    %v281 = vmin.f32 %v255, 0.0
    %v282 = vmin.f32 %v258, 0.0
    %v283 = vmin.f32 %v263, 0.0
    %v284 = vmin.f32 %v266, 0.0
    %v285 = vmul.f32 %v277, 1.442695
    %v286 = vpow.pop %v285
    %v287 = vmul.f32 %v278, 1.442695
    %v288 = vpow.pop %v287
    %v289 = vmul.f32 %v279, 1.442695
    %v290 = vpow.pop %v289
    %v291 = vmul.f32 %v280, 1.442695
    %v292 = vpow.pop %v291
    %v293 = vmul.f32 %v281, 1.442695
    %v294 = vpow.pop %v293
    %v295 = vmul.f32 %v282, 1.442695
    %v296 = vpow.pop %v295
    %v297 = vmul.f32 %v283, 1.442695
    %v298 = vpow.pop %v297
    %v299 = vmul.f32 %v284, 1.442695
    %v300 = vpow.pop %v299
    %v301 = vsub.f32 %v286, 1.0
    %v302 = vsub.f32 %v288, 1.0
    %v303 = vsub.f32 %v290, 1.0
    %v304 = vsub.f32 %v292, 1.0
    %v305 = vsub.f32 %v294, 1.0
    %v306 = vsub.f32 %v296, 1.0
    %v307 = vsub.f32 %v298, 1.0
    %v308 = vsub.f32 %v300, 1.0
    %v309 = vsel %vm269, %v239, %v301
    %v310 = vsel %vm270, %v242, %v302
    %v311 = vsel %vm271, %v247, %v303
    %v312 = vsel %vm272, %v250, %v304
    %v313 = vsel %vm273, %v255, %v305
    %v314 = vsel %vm274, %v258, %v306
    %v315 = vsel %vm275, %v263, %v307
    %v316 = vsel %vm276, %v266, %v308
    %v317 = vpack.c.bf16 %v310, %v309
    %v318 = vpack.c.bf16 %v312, %v311
    %v319 = vpack.c.bf16 %v314, %v313
    %v320 = vpack.c.bf16 %v316, %v315
    %s321 = scalar_lea.vmem [#allocation2], 16
    %v322 = vld [vmem:[%s321] sm:$0xf]
    %v323 = vld [vmem:[%s321 + $0x4] sm:$0xf]
    %v324 = vld [vmem:[%s321 + $0x8] sm:$0xf]
    %v325 = vld [vmem:[%s321 + $0xc] sm:$0xf]
    %v330 = vunpack.c.l.b16 %v322
    %v331 = vunpack.c.l.b16 %v323
    %v332 = vunpack.c.l.b16 %v324
    %v333 = vunpack.c.l.b16 %v325
    %v334 = vpack.c.b16 %v331, %v330
    %v335 = vpack.c.b16 %v333, %v332
    %v339 = vsel %vm85, %v317, 0
    %v342 = vsel %vm85, %v318, 0
    %v345 = vsel %vm85, %v319, 0
    %v348 = vsel %vm85, %v320, 0
    %350 = vmatprep.subr.bf16.mxu0 0
    %351 = vmatpush1.bf16.msra.mxu0 %v334
    %352 = vmatprep.subr.bf16.mxu0 0
    %353 = vmatpush1.bf16.msra.mxu0 %v335
    %354 = vmatprep.subr.bf16.mxu0 0
    %355 = vmatpush1.bf16.msra.mxu0 0
    %356 = vmatprep.subr.bf16.mxu0 0
    %357 = vmatpush1.bf16.msra.mxu0 0
    %358 = vmatprep.subr.bf16.mxu0 0
    %359 = vmatpush1.bf16.msra.mxu0 0
    %360 = vmatprep.subr.bf16.mxu0 0
    %361 = vmatpush1.bf16.msra.mxu0 0
    %362 = vmatprep.subr.bf16.mxu0 0
    %363 = vmatpush1.bf16.msra.mxu0 0
    %364 = vmatprep.subr.bf16.mxu0 0
    %365 = vmatpush1.bf16.msra.mxu0 0
    %366 = vmatprep.subr.bf16.mxu0 0
    %367 = vmatpush1.bf16.msra.mxu0 0
    %368 = vmatprep.subr.bf16.mxu0 0
    %369 = vmatpush1.bf16.msra.mxu0 0
    %370 = vmatprep.subr.bf16.mxu0 0
    %371 = vmatpush1.bf16.msra.mxu0 0
    %372 = vmatprep.subr.bf16.mxu0 0
    %373 = vmatpush1.bf16.msra.mxu0 0
    %374 = vmatprep.subr.bf16.mxu0 0
    %375 = vmatpush1.bf16.msra.mxu0 0
    %376 = vmatprep.subr.bf16.mxu0 0
    %377 = vmatpush1.bf16.msra.mxu0 0
    %378 = vmatprep.subr.bf16.mxu0 0
    %379 = vmatpush1.bf16.msra.mxu0 0
    %380 = vmatprep.subr.bf16.mxu0 0
    %381 = vmatpush1.bf16.msra.mxu0 0
    %382 = vmatprep.mubr.bf16.mxu0 0
    %383 = vmatmul.mubr.bf16.gmra.mrb[0].mxu0 %v339
    %v384 = vpop.f32.mrb[0].mxu0
    %v385 = vadd.f32 0.0, %v384
    %v386 = vpop.f32.mrb[0].mxu0
    %v387 = vpop.f32.mrb[0].mxu0
    %v388 = vadd.f32 0.0, %v387
    %v389 = vpop.f32.mrb[0].mxu0
    %390 = vmatprep.mubr.bf16.mxu0 0
    %391 = vmatmul.mubr.bf16.gmra.mrb[0].mxu0 %v342
    %v392 = vpop.f32.mrb[0].mxu0
    %v393 = vadd.f32 0.0, %v392
    %v394 = vpop.f32.mrb[0].mxu0
    %v395 = vpop.f32.mrb[0].mxu0
    %v396 = vadd.f32 0.0, %v395
    %v397 = vpop.f32.mrb[0].mxu0
    %398 = vmatprep.mubr.bf16.mxu0 0
    %399 = vmatmul.mubr.bf16.gmra.mrb[0].mxu0 %v345
    %v400 = vpop.f32.mrb[0].mxu0
    %v401 = vadd.f32 0.0, %v400
    %v402 = vpop.f32.mrb[0].mxu0
    %v403 = vpop.f32.mrb[0].mxu0
    %v404 = vadd.f32 0.0, %v403
    %v405 = vpop.f32.mrb[0].mxu0
    %406 = vmatprep.mubr.bf16.mxu0 0
    %407 = vmatmul.mubr.bf16.gmra.mrb[0].mxu0 %v348
    %v408 = vpop.f32.mrb[0].mxu0
    %v409 = vadd.f32 0.0, %v408
    %v410 = vpop.f32.mrb[0].mxu0
    %v411 = vpop.f32.mrb[0].mxu0
    %v412 = vadd.f32 0.0, %v411
    %v413 = vpop.f32.mrb[0].mxu0
    %414 = vdwg.mxu0
    %v415 = vpack.c.bf16 %v388, %v385
    %v416 = vpack.c.bf16 %v396, %v393
    %v417 = vpack.c.bf16 %v404, %v401
    %v418 = vpack.c.bf16 %v412, %v409
    %v419 = vlaneseq
    %v420 = vshrl.u32 %v419, 7
    %v421 = vsub.s32 1, %v420
    %v422 = vrot.slane %v40, %v421
    %423 = vmatprep.subr.bf16.mxu0 0
    %424 = vmatpush1.bf16.msra.mxu0 %v415
    %425 = vmatprep.subr.bf16.mxu0 0
    %426 = vmatpush1.bf16.msra.mxu0 %v416
    %427 = vmatprep.subr.bf16.mxu0 0
    %428 = vmatpush1.bf16.msra.mxu0 %v417
    %429 = vmatprep.subr.bf16.mxu0 0
    %430 = vmatpush1.bf16.msra.mxu0 %v418
    %431 = vmatprep.subr.bf16.mxu0 0
    %432 = vmatpush1.bf16.msra.mxu0 0
    %433 = vmatprep.subr.bf16.mxu0 0
    %434 = vmatpush1.bf16.msra.mxu0 0
    %435 = vmatprep.subr.bf16.mxu0 0
    %436 = vmatpush1.bf16.msra.mxu0 0
    %437 = vmatprep.subr.bf16.mxu0 0
    %438 = vmatpush1.bf16.msra.mxu0 0
    %439 = vmatprep.subr.bf16.mxu0 0
    %440 = vmatpush1.bf16.msra.mxu0 0
    %441 = vmatprep.subr.bf16.mxu0 0
    %442 = vmatpush1.bf16.msra.mxu0 0
    %443 = vmatprep.subr.bf16.mxu0 0
    %444 = vmatpush1.bf16.msra.mxu0 0
    %445 = vmatprep.subr.bf16.mxu0 0
    %446 = vmatpush1.bf16.msra.mxu0 0
    %447 = vmatprep.subr.bf16.mxu0 0
    %448 = vmatpush1.bf16.msra.mxu0 0
    %449 = vmatprep.subr.bf16.mxu0 0
    %450 = vmatpush1.bf16.msra.mxu0 0
    %451 = vmatprep.subr.bf16.mxu0 0
    %452 = vmatpush1.bf16.msra.mxu0 0
    %453 = vmatprep.subr.bf16.mxu0 0
    %454 = vmatpush1.bf16.msra.mxu0 0
    %455 = vmatprep.mubr.bf16.mxu0 0
    %456 = vmatmul.mubr.bf16.gmra.mrb[0].mxu0 %v193
    %v457 = vpop.f32.mrb[0].mxu0
    %v458 = vadd.f32 %v422, %v457
    %v459 = vpop.f32.mrb[0].mxu0
    %v460 = vpop.f32.mrb[0].mxu0
    %v461 = vadd.f32 %v422, %v460
    %v462 = vpop.f32.mrb[0].mxu0
    %463 = vmatprep.mubr.bf16.mxu0 0
    %464 = vmatmul.mubr.bf16.gmra.mrb[0].mxu0 %v196
    %v465 = vpop.f32.mrb[0].mxu0
    %v466 = vadd.f32 %v422, %v465
    %v467 = vpop.f32.mrb[0].mxu0
    %v468 = vpop.f32.mrb[0].mxu0
    %v469 = vadd.f32 %v422, %v468
    %v470 = vpop.f32.mrb[0].mxu0
    %471 = vmatprep.mubr.bf16.mxu0 0
    %472 = vmatmul.mubr.bf16.gmra.mrb[0].mxu0 %v199
    %v473 = vpop.f32.mrb[0].mxu0
    %v474 = vadd.f32 %v422, %v473
    %v475 = vpop.f32.mrb[0].mxu0
    %v476 = vpop.f32.mrb[0].mxu0
    %v477 = vadd.f32 %v422, %v476
    %v478 = vpop.f32.mrb[0].mxu0
    %479 = vmatprep.mubr.bf16.mxu0 0
    %480 = vmatmul.mubr.bf16.gmra.mrb[0].mxu0 %v202
    %v481 = vpop.f32.mrb[0].mxu0
    %v482 = vadd.f32 %v422, %v481
    %v483 = vpop.f32.mrb[0].mxu0
    %v484 = vpop.f32.mrb[0].mxu0
    %v485 = vadd.f32 %v422, %v484
    %v486 = vpop.f32.mrb[0].mxu0
    %487 = vdwg.mxu0
    %vm488 = vcmp.gt.f32.partialorder %v458, 0.0
    %vm489 = vcmp.gt.f32.partialorder %v461, 0.0
    %vm490 = vcmp.gt.f32.partialorder %v466, 0.0
    %vm491 = vcmp.gt.f32.partialorder %v469, 0.0
    %vm492 = vcmp.gt.f32.partialorder %v474, 0.0
    %vm493 = vcmp.gt.f32.partialorder %v477, 0.0
    %vm494 = vcmp.gt.f32.partialorder %v482, 0.0
    %vm495 = vcmp.gt.f32.partialorder %v485, 0.0
    %v496 = vmin.f32 %v458, 0.0
    %v497 = vmin.f32 %v461, 0.0
    %v498 = vmin.f32 %v466, 0.0
    %v499 = vmin.f32 %v469, 0.0
    %v500 = vmin.f32 %v474, 0.0
    %v501 = vmin.f32 %v477, 0.0
    %v502 = vmin.f32 %v482, 0.0
    %v503 = vmin.f32 %v485, 0.0
    %v504 = vmul.f32 %v496, 1.442695
    %v505 = vpow.pop %v504
    %v506 = vmul.f32 %v497, 1.442695
    %v507 = vpow.pop %v506
    %v508 = vmul.f32 %v498, 1.442695
    %v509 = vpow.pop %v508
    %v510 = vmul.f32 %v499, 1.442695
    %v511 = vpow.pop %v510
    %v512 = vmul.f32 %v500, 1.442695
    %v513 = vpow.pop %v512
    %v514 = vmul.f32 %v501, 1.442695
    %v515 = vpow.pop %v514
    %v516 = vmul.f32 %v502, 1.442695
    %v517 = vpow.pop %v516
    %v518 = vmul.f32 %v503, 1.442695
    %v519 = vpow.pop %v518
    %v520 = vsub.f32 %v505, 1.0
    %v521 = vsub.f32 %v507, 1.0
    %v522 = vsub.f32 %v509, 1.0
    %v523 = vsub.f32 %v511, 1.0
    %v524 = vsub.f32 %v513, 1.0
    %v525 = vsub.f32 %v515, 1.0
    %v526 = vsub.f32 %v517, 1.0
    %v527 = vsub.f32 %v519, 1.0
    %v528 = vsel %vm488, %v458, %v520
    %v529 = vsel %vm489, %v461, %v521
    %v530 = vsel %vm490, %v466, %v522
    %v531 = vsel %vm491, %v469, %v523
    %v532 = vsel %vm492, %v474, %v524
    %v533 = vsel %vm493, %v477, %v525
    %v534 = vsel %vm494, %v482, %v526
    %v535 = vsel %vm495, %v485, %v527
    %v536 = vpack.c.bf16 %v529, %v528
    %v537 = vpack.c.bf16 %v531, %v530
    %v538 = vpack.c.bf16 %v533, %v532
    %v539 = vpack.c.bf16 %v535, %v534
    %s540 = scalar_lea.vmem [#allocation2], 32
    %v541 = vld [vmem:[%s540] sm:$0xf]
    %v542 = vld [vmem:[%s540 + $0x4] sm:$0xf]
    %v543 = vld [vmem:[%s540 + $0x8] sm:$0xf]
    %v544 = vld [vmem:[%s540 + $0xc] sm:$0xf]
    %v549 = vunpack.c.l.b16 %v541
    %v550 = vunpack.c.l.b16 %v542
    %v551 = vunpack.c.l.b16 %v543
    %v552 = vunpack.c.l.b16 %v544
    %v553 = vpack.c.b16 %v550, %v549
    %v554 = vpack.c.b16 %v552, %v551
    %v558 = vsel %vm85, %v536, 0
    %v561 = vsel %vm85, %v537, 0
    %v564 = vsel %vm85, %v538, 0
    %v567 = vsel %vm85, %v539, 0
    %569 = vmatprep.subr.bf16.mxu0 0
    %570 = vmatpush1.bf16.msra.mxu0 %v553
    %571 = vmatprep.subr.bf16.mxu0 0
    %572 = vmatpush1.bf16.msra.mxu0 %v554
    %573 = vmatprep.subr.bf16.mxu0 0
    %574 = vmatpush1.bf16.msra.mxu0 0
    %575 = vmatprep.subr.bf16.mxu0 0
    %576 = vmatpush1.bf16.msra.mxu0 0
    %577 = vmatprep.subr.bf16.mxu0 0
    %578 = vmatpush1.bf16.msra.mxu0 0
    %579 = vmatprep.subr.bf16.mxu0 0
    %580 = vmatpush1.bf16.msra.mxu0 0
    %581 = vmatprep.subr.bf16.mxu0 0
    %582 = vmatpush1.bf16.msra.mxu0 0
    %583 = vmatprep.subr.bf16.mxu0 0
    %584 = vmatpush1.bf16.msra.mxu0 0
    %585 = vmatprep.subr.bf16.mxu0 0
    %586 = vmatpush1.bf16.msra.mxu0 0
    %587 = vmatprep.subr.bf16.mxu0 0
    %588 = vmatpush1.bf16.msra.mxu0 0
    %589 = vmatprep.subr.bf16.mxu0 0
    %590 = vmatpush1.bf16.msra.mxu0 0
    %591 = vmatprep.subr.bf16.mxu0 0
    %592 = vmatpush1.bf16.msra.mxu0 0
    %593 = vmatprep.subr.bf16.mxu0 0
    %594 = vmatpush1.bf16.msra.mxu0 0
    %595 = vmatprep.subr.bf16.mxu0 0
    %596 = vmatpush1.bf16.msra.mxu0 0
    %597 = vmatprep.subr.bf16.mxu0 0
    %598 = vmatpush1.bf16.msra.mxu0 0
    %599 = vmatprep.subr.bf16.mxu0 0
    %600 = vmatpush1.bf16.msra.mxu0 0
    %601 = vmatprep.mubr.bf16.mxu0 0
    %602 = vmatmul.mubr.bf16.gmra.mrb[0].mxu0 %v558
    %v603 = vpop.f32.mrb[0].mxu0
    %v604 = vadd.f32 0.0, %v603
    %v605 = vpop.f32.mrb[0].mxu0
    %v606 = vpop.f32.mrb[0].mxu0
    %v607 = vadd.f32 0.0, %v606
    %v608 = vpop.f32.mrb[0].mxu0
    %609 = vmatprep.mubr.bf16.mxu0 0
    %610 = vmatmul.mubr.bf16.gmra.mrb[0].mxu0 %v561
    %v611 = vpop.f32.mrb[0].mxu0
    %v612 = vadd.f32 0.0, %v611
    %v613 = vpop.f32.mrb[0].mxu0
    %v614 = vpop.f32.mrb[0].mxu0
    %v615 = vadd.f32 0.0, %v614
    %v616 = vpop.f32.mrb[0].mxu0
    %617 = vmatprep.mubr.bf16.mxu0 0
    %618 = vmatmul.mubr.bf16.gmra.mrb[0].mxu0 %v564
    %v619 = vpop.f32.mrb[0].mxu0
    %v620 = vadd.f32 0.0, %v619
    %v621 = vpop.f32.mrb[0].mxu0
    %v622 = vpop.f32.mrb[0].mxu0
    %v623 = vadd.f32 0.0, %v622
    %v624 = vpop.f32.mrb[0].mxu0
    %625 = vmatprep.mubr.bf16.mxu0 0
    %626 = vmatmul.mubr.bf16.gmra.mrb[0].mxu0 %v567
    %v627 = vpop.f32.mrb[0].mxu0
    %v628 = vadd.f32 0.0, %v627
    %v629 = vpop.f32.mrb[0].mxu0
    %v630 = vpop.f32.mrb[0].mxu0
    %v631 = vadd.f32 0.0, %v630
    %v632 = vpop.f32.mrb[0].mxu0
    %633 = vdwg.mxu0
    %v634 = vpack.c.bf16 %v607, %v604
    %v635 = vpack.c.bf16 %v615, %v612
    %v636 = vpack.c.bf16 %v623, %v620
    %v637 = vpack.c.bf16 %v631, %v628
    %v638 = vlaneseq
    %v639 = vshrl.u32 %v638, 7
    %v640 = vsub.s32 2, %v639
    %v641 = vrot.slane %v40, %v640
    %642 = vmatprep.subr.bf16.mxu0 0
    %643 = vmatpush1.bf16.msra.mxu0 %v634
    %644 = vmatprep.subr.bf16.mxu0 0
    %645 = vmatpush1.bf16.msra.mxu0 %v635
    %646 = vmatprep.subr.bf16.mxu0 0
    %647 = vmatpush1.bf16.msra.mxu0 %v636
    %648 = vmatprep.subr.bf16.mxu0 0
    %649 = vmatpush1.bf16.msra.mxu0 %v637
    %650 = vmatprep.subr.bf16.mxu0 0
    %651 = vmatpush1.bf16.msra.mxu0 0
    %652 = vmatprep.subr.bf16.mxu0 0
    %653 = vmatpush1.bf16.msra.mxu0 0
    %654 = vmatprep.subr.bf16.mxu0 0
    %655 = vmatpush1.bf16.msra.mxu0 0
    %656 = vmatprep.subr.bf16.mxu0 0
    %657 = vmatpush1.bf16.msra.mxu0 0
    %658 = vmatprep.subr.bf16.mxu0 0
    %659 = vmatpush1.bf16.msra.mxu0 0
    %660 = vmatprep.subr.bf16.mxu0 0
    %661 = vmatpush1.bf16.msra.mxu0 0
    %662 = vmatprep.subr.bf16.mxu0 0
    %663 = vmatpush1.bf16.msra.mxu0 0
    %664 = vmatprep.subr.bf16.mxu0 0
    %665 = vmatpush1.bf16.msra.mxu0 0
    %666 = vmatprep.subr.bf16.mxu0 0
    %667 = vmatpush1.bf16.msra.mxu0 0
    %668 = vmatprep.subr.bf16.mxu0 0
    %669 = vmatpush1.bf16.msra.mxu0 0
    %670 = vmatprep.subr.bf16.mxu0 0
    %671 = vmatpush1.bf16.msra.mxu0 0
    %672 = vmatprep.subr.bf16.mxu0 0
    %673 = vmatpush1.bf16.msra.mxu0 0
    %674 = vmatprep.mubr.bf16.mxu0 0
    %675 = vmatmul.mubr.bf16.gmra.mrb[0].mxu0 %v193
    %v676 = vpop.f32.mrb[0].mxu0
    %v677 = vadd.f32 %v641, %v676
    %v678 = vpop.f32.mrb[0].mxu0
    %v679 = vpop.f32.mrb[0].mxu0
    %v680 = vadd.f32 %v641, %v679
    %v681 = vpop.f32.mrb[0].mxu0
    %682 = vmatprep.mubr.bf16.mxu0 0
    %683 = vmatmul.mubr.bf16.gmra.mrb[0].mxu0 %v196
    %v684 = vpop.f32.mrb[0].mxu0
    %v685 = vadd.f32 %v641, %v684
    %v686 = vpop.f32.mrb[0].mxu0
    %v687 = vpop.f32.mrb[0].mxu0
    %v688 = vadd.f32 %v641, %v687
    %v689 = vpop.f32.mrb[0].mxu0
    %690 = vmatprep.mubr.bf16.mxu0 0
    %691 = vmatmul.mubr.bf16.gmra.mrb[0].mxu0 %v199
    %v692 = vpop.f32.mrb[0].mxu0
    %v693 = vadd.f32 %v641, %v692
    %v694 = vpop.f32.mrb[0].mxu0
    %v695 = vpop.f32.mrb[0].mxu0
    %v696 = vadd.f32 %v641, %v695
    %v697 = vpop.f32.mrb[0].mxu0
    %698 = vmatprep.mubr.bf16.mxu0 0
    %699 = vmatmul.mubr.bf16.gmra.mrb[0].mxu0 %v202
    %v700 = vpop.f32.mrb[0].mxu0
    %v701 = vadd.f32 %v641, %v700
    %v702 = vpop.f32.mrb[0].mxu0
    %v703 = vpop.f32.mrb[0].mxu0
    %v704 = vadd.f32 %v641, %v703
    %v705 = vpop.f32.mrb[0].mxu0
    %706 = vdwg.mxu0
    %v707 = vpack.c.bf16 %v680, %v677
    %v708 = vpack.c.bf16 %v688, %v685
    %v709 = vpack.c.bf16 %v696, %v693
    %v710 = vpack.c.bf16 %v704, %v701
    %s711 = scalar_lea.vmem [#allocation2], 48
    %v712 = vld [vmem:[%s711] sm:$0xf]
    %v713 = vld [vmem:[%s711 + $0x4] sm:$0xf]
    %v714 = vld [vmem:[%s711 + $0x8] sm:$0xf]
    %v715 = vld [vmem:[%s711 + $0xc] sm:$0xf]
    %v716 = vlaneseq
    %v717 = vshrl.u32 %v716, 7
    %v718 = vsub.s32 3, %v717
    %v719 = vrot.slane %v40, %v718
    %v724 = vunpack.c.l.b16 %v712
    %v725 = vunpack.c.l.b16 %v713
    %v726 = vunpack.c.l.b16 %v714
    %v727 = vunpack.c.l.b16 %v715
    %v728 = vpack.c.b16 %v725, %v724
    %v729 = vpack.c.b16 %v727, %v726
    %v733 = vsel %vm85, %v707, 0
    %v736 = vsel %vm85, %v708, 0
    %v739 = vsel %vm85, %v709, 0
    %v742 = vsel %vm85, %v710, 0
    %744 = vmatprep.subr.bf16.mxu0 0
    %745 = vmatpush1.bf16.msra.mxu0 %v728
    %746 = vmatprep.subr.bf16.mxu0 0
    %747 = vmatpush1.bf16.msra.mxu0 %v729
    %748 = vmatprep.subr.bf16.mxu0 0
    %749 = vmatpush1.bf16.msra.mxu0 0
    %750 = vmatprep.subr.bf16.mxu0 0
    %751 = vmatpush1.bf16.msra.mxu0 0
    %752 = vmatprep.subr.bf16.mxu0 0
    %753 = vmatpush1.bf16.msra.mxu0 0
    %754 = vmatprep.subr.bf16.mxu0 0
    %755 = vmatpush1.bf16.msra.mxu0 0
    %756 = vmatprep.subr.bf16.mxu0 0
    %757 = vmatpush1.bf16.msra.mxu0 0
    %758 = vmatprep.subr.bf16.mxu0 0
    %759 = vmatpush1.bf16.msra.mxu0 0
    %760 = vmatprep.subr.bf16.mxu0 0
    %761 = vmatpush1.bf16.msra.mxu0 0
    %762 = vmatprep.subr.bf16.mxu0 0
    %763 = vmatpush1.bf16.msra.mxu0 0
    %764 = vmatprep.subr.bf16.mxu0 0
    %765 = vmatpush1.bf16.msra.mxu0 0
    %766 = vmatprep.subr.bf16.mxu0 0
    %767 = vmatpush1.bf16.msra.mxu0 0
    %768 = vmatprep.subr.bf16.mxu0 0
    %769 = vmatpush1.bf16.msra.mxu0 0
    %770 = vmatprep.subr.bf16.mxu0 0
    %771 = vmatpush1.bf16.msra.mxu0 0
    %772 = vmatprep.subr.bf16.mxu0 0
    %773 = vmatpush1.bf16.msra.mxu0 0
    %774 = vmatprep.subr.bf16.mxu0 0
    %775 = vmatpush1.bf16.msra.mxu0 0
    %776 = vmatprep.mubr.bf16.mxu0 0
    %777 = vmatmul.mubr.bf16.gmra.mrb[0].mxu0 %v733
    %v778 = vpop.f32.mrb[0].mxu0
    %v779 = vadd.f32 %v719, %v778
    %v780 = vpop.f32.mrb[0].mxu0
    %v781 = vpop.f32.mrb[0].mxu0
    %v782 = vadd.f32 %v719, %v781
    %v783 = vpop.f32.mrb[0].mxu0
    %784 = vmatprep.mubr.bf16.mxu0 0
    %785 = vmatmul.mubr.bf16.gmra.mrb[0].mxu0 %v736
    %v786 = vpop.f32.mrb[0].mxu0
    %v787 = vadd.f32 %v719, %v786
    %v788 = vpop.f32.mrb[0].mxu0
    %v789 = vpop.f32.mrb[0].mxu0
    %v790 = vadd.f32 %v719, %v789
    %v791 = vpop.f32.mrb[0].mxu0
    %792 = vmatprep.mubr.bf16.mxu0 0
    %793 = vmatmul.mubr.bf16.gmra.mrb[0].mxu0 %v739
    %v794 = vpop.f32.mrb[0].mxu0
    %v795 = vadd.f32 %v719, %v794
    %v796 = vpop.f32.mrb[0].mxu0
    %v797 = vpop.f32.mrb[0].mxu0
    %v798 = vadd.f32 %v719, %v797
    %v799 = vpop.f32.mrb[0].mxu0
    %800 = vmatprep.mubr.bf16.mxu0 0
    %801 = vmatmul.mubr.bf16.gmra.mrb[0].mxu0 %v742
    %v802 = vpop.f32.mrb[0].mxu0
    %v803 = vadd.f32 %v719, %v802
    %v804 = vpop.f32.mrb[0].mxu0
    %v805 = vpop.f32.mrb[0].mxu0
    %v806 = vadd.f32 %v719, %v805
    %v807 = vpop.f32.mrb[0].mxu0
    %808 = vdwg.mxu0
    %817 = vrot.lane.b32.xlu0 %v779, 32
    %v818 = vpop.permute.xlu0 %817
    %819 = vrot.lane.b32.xlu0 %v782, 32
    %v820 = vpop.permute.xlu0 %819
    %821 = vrot.lane.b32.xlu0 %v787, 32
    %v822 = vpop.permute.xlu0 %821
    %823 = vrot.lane.b32.xlu0 %v790, 32
    %v824 = vpop.permute.xlu0 %823
    %825 = vrot.lane.b32.xlu0 %v795, 32
    %v826 = vpop.permute.xlu0 %825
    %827 = vrot.lane.b32.xlu0 %v798, 32
    %v828 = vpop.permute.xlu0 %827
    %829 = vrot.lane.b32.xlu0 %v803, 32
    %v830 = vpop.permute.xlu0 %829
    %831 = vrot.lane.b32.xlu0 %v806, 32
    %v832 = vpop.permute.xlu0 %831
    %v841 = vsel %vm85, %v677, %v818
    %v842 = vsel %vm85, %v680, %v820
    %v843 = vsel %vm85, %v685, %v822
    %v844 = vsel %vm85, %v688, %v824
    %v845 = vsel %vm85, %v693, %v826
    %v846 = vsel %vm85, %v696, %v828
    %v847 = vsel %vm85, %v701, %v830
    %v848 = vsel %vm85, %v704, %v832
    %vm849 = vcmask 326656
    %850 = vst.msk [vmem:[%s4] sm:$0xff] %vm849, %v841
    %851 = vst.msk [vmem:[%s4 + $0x8] sm:$0xff] %vm849, %v842
    %852 = vst.msk [vmem:[%s4 + $0x10] sm:$0xff] %vm849, %v843
    %853 = vst.msk [vmem:[%s4 + $0x18] sm:$0xff] %vm849, %v844
    %854 = vst.msk [vmem:[%s4 + $0x20] sm:$0xff] %vm849, %v845
    %855 = vst.msk [vmem:[%s4 + $0x28] sm:$0xff] %vm849, %v846
    %856 = vst.msk [vmem:[%s4 + $0x30] sm:$0xff] %vm849, %v847
    %857 = vst.msk [vmem:[%s4 + $0x38] sm:$0xff] %vm849, %v848
    // Predicated region
    $region22: #{tpu_custom_call.1} parent=1 // pred_check
      _
    $region23: #{tpu_custom_call.1} parent=1 // pred_check_branch
      %859 = sbr.rel (0) target = $region25
    $region24: #{tpu_custom_call.1} parent=1 // pred_region
      _
    $region25: #{tpu_custom_call.1} parent=1 // pred_fallthru
      _
    // Predicated region
    $region26: #{tpu_custom_call.1} parent=1 // pred_check
      _
    $region27: #{tpu_custom_call.1} parent=1 // pred_check_branch
      %861 = sbr.rel (0) target = $region29
    $region28: #{tpu_custom_call.1} parent=1 // pred_region
      _
    $region29: #{tpu_custom_call.1} parent=1 // pred_fallthru
      _
    %862 = vsyncpa [#allocation3], 1

</llo_original>
